<compile_context>
chip_gen: v7x
topology: tpu7x:2x2x1
jax: 0.10.0
libtpu: 0.0.40
codegen_flags: <defaults>
</compile_context>

<pallas_src>
import jax
import jax.numpy as jnp
from jax.experimental import pallas as pl
from jax.experimental.pallas import tpu as pltpu


def _add_one_kernel(x_ref, o_ref):
    # Hot path: one VPU elementwise add over the current VMEM tile.
    o_ref[...] = x_ref[...] + jnp.asarray(1, dtype=x_ref.dtype)


def _sublane_multiple(dtype) -> int:
    # Native sublane tiling: 8 for 32-bit, 16 for 16-bit, 32 for 8-bit dtypes.
    itemsize = jnp.dtype(dtype).itemsize
    return max(8, 32 // max(1, itemsize))


def _choose_slab(n_elems: int, sub_mult: int):
    """Pick a lane-dense (rows, width) factorization of n_elems (no padding).

    Prefers wide last dims: fewer/larger DMA descriptors and unmasked
    full-width vector stores. Returns None if no clean factorization exists.
    """
    for width in (2048, 1024, 512, 256, 128):
        if n_elems % width == 0:
            rows = n_elems // width
            if rows % sub_mult == 0:
                return rows, width
    return None


# ~2 MiB per input tile => ~8 MiB double-buffered in+out working set.
_TARGET_TILE_BYTES = 2 * 1024 * 1024


def _tiled_add_one_2d(x2d, tile_rows: int):
    rows, width = x2d.shape
    return pl.pallas_call(
        _add_one_kernel,
        out_shape=jax.ShapeDtypeStruct((rows, width), x2d.dtype),
        grid_spec=pltpu.PrefetchScalarGridSpec(
            num_scalar_prefetch=0,
            grid=(pl.cdiv(rows, tile_rows),),
            in_specs=[pl.BlockSpec((tile_rows, width), lambda i: (i, 0))],
            out_specs=pl.BlockSpec((tile_rows, width), lambda i: (i, 0)),
        ),
        compiler_params=pltpu.CompilerParams(
            # Independent row tiles: allow megacore sharding (v7x has 2 TCs).
            dimension_semantics=("parallel",),
        ),
    )(x2d)


def demo_forward(x):
    """Pallas implementation of Demo.forward: returns x + 1 (same shape/dtype)."""
    orig_shape = x.shape
    dtype = x.dtype
    n_elems = x.size
    itemsize = jnp.dtype(dtype).itemsize
    sub_mult = _sublane_multiple(dtype)

    # NOTE: for genuinely tiny inputs (a few KiB) a plain `x + 1` would beat
    # the fixed pallas_call launch cost; we always take the Pallas path here
    # so the kernel itself is exercised.

    slab = _choose_slab(n_elems, sub_mult)
    if slab is not None:
        # Common case: clean lane-dense factorization, zero padding copies.
        rows, width = slab
        x2d = x.reshape(rows, width)
    else:
        # Rare fallback: pad the flat data up to one (sub_mult, 128) unit.
        width = 128
        unit = sub_mult * width
        padded = ((n_elems + unit - 1) // unit) * unit
        x_flat = x.reshape(-1)
        x_flat = jnp.concatenate(
            [x_flat, jnp.zeros((padded - n_elems,), dtype=dtype)]
        )
        rows = padded // width
        x2d = x_flat.reshape(rows, width)

    # Row-tile size: ~_TARGET_TILE_BYTES per input tile, rounded down to the
    # dtype's native sublane multiple, clamped to the slab height.
    target_rows = max(sub_mult, _TARGET_TILE_BYTES // (width * itemsize))
    target_rows = max(sub_mult, (target_rows // sub_mult) * sub_mult)
    tile_rows = min(rows, target_rows)

    out2d = _tiled_add_one_2d(x2d, tile_rows)

    if slab is not None:
        return out2d.reshape(orig_shape)
    return out2d.reshape(-1)[:n_elems].reshape(orig_shape)


if __name__ == "__main__":
    key = jax.random.PRNGKey(0)

    # Small NCHW input consistent with a typical module call.
    x_small = jax.random.normal(key, (2, 4, 16, 16), dtype=jnp.float32)
    out_small = jax.block_until_ready(demo_forward(x_small))
    assert out_small.shape == x_small.shape and out_small.dtype == x_small.dtype
    assert jnp.allclose(out_small, x_small + 1.0, atol=0.0, rtol=0.0)

    # Moderately larger input to exercise the multi-tile pipelined path.
    x_big = jax.random.normal(key, (8, 256, 1024), dtype=jnp.float32)
    out_big = jax.block_until_ready(demo_forward(x_big))
    assert out_big.shape == x_big.shape and out_big.dtype == x_big.dtype
    assert jnp.allclose(out_big, x_big + 1.0, atol=0.0, rtol=0.0)

    print("KERNEL_OK")
</pallas_src>

<mosaic_0001>
module attributes {stable_mosaic.version = 11 : i64} {
  func.func @_add_one_kernel(%arg0: i32, %arg1: memref<8x256xf32, #tpu.memory_space<vmem>>, %arg2: memref<8x256xf32, #tpu.memory_space<vmem>>) attributes {dimension_semantics = [#tpu.dimension_semantics<parallel>], iteration_bounds = array<i64: 1>, scalar_prefetch = 0 : i64, scratch_operands = 0 : i64, tpu.core_type = #tpu.core_type<tc>, window_params = [{transform_indices = @transform_0, window_bounds = array<i64: 8, 256>}, {transform_indices = @transform_1, window_bounds = array<i64: 8, 256>}]} {
    %c0 = arith.constant 0 : index
    %c0_0 = arith.constant 0 : index
    %0 = vector.load %arg1[%c0, %c0_0] : memref<8x256xf32, #tpu.memory_space<vmem>>, vector<8x256xf32>
    %cst = arith.constant 1.000000e+00 : f32
    %1 = vector.broadcast %cst : f32 to vector<8x256xf32>
    %2 = arith.addf %0, %1 : vector<8x256xf32>
    %c0_1 = arith.constant 0 : index
    %c0_2 = arith.constant 0 : index
    %3 = vector.load %arg2[%c0_1, %c0_2] : memref<8x256xf32, #tpu.memory_space<vmem>>, vector<8x256xf32>
    tpu.vector_store %arg2[%c0_1, %c0_2], %2 {strides = array<i32>} : memref<8x256xf32, #tpu.memory_space<vmem>>, vector<8x256xf32>,
    return
  }
  func.func @transform_0(%arg0: i32) -> (i32, i32) {
    %c0_i32 = arith.constant 0 : i32
    %c0_i32_0 = arith.constant 0 : i32
    return %arg0, %c0_i32 : i32, i32
  }
  func.func @transform_1(%arg0: i32) -> (i32, i32) {
    %c0_i32 = arith.constant 0 : i32
    %c0_i32_0 = arith.constant 0 : i32
    return %arg0, %c0_i32 : i32, i32
  }
}

</mosaic_0001>

<llo_original>
// kernel: tpu_custom_call.1
$region0: #{tpu_custom_call.1}
  #allocation0 [shape = 'u32[]', space=smem, size = 0x4, offset = 0x4, fixed_abs, tag = 'smem constant byte address 0x4 - core index']
  #allocation1 [shape = 'u32[144,128]{1,0:T(1,128)}', space=vmem, size = 0x12000, scoped, tag = 'internal scratch']
  %s0 = inlined_call_operand.hbm [shape: f32[8,256], index: 0, kind: input, shape index: {}]
  %s1 = inlined_call_operand.hbm [shape: f32[8,256], index: 1, kind: output, shape index: {}]
  %s2 = sld [smem:[#allocation0]]
  $region18: #{tpu_custom_call.1} parent=0
    _
  %s4 = ssub.s32 1, %s2
  %s5 = scalar_select 0, %s4, %s2
  $region1: #{tpu_custom_call.1} parent=0
    #allocation2 [shape = 'u8[8192]{0}', space=vmem, size = 0x2000, scoped, tag = 'input window, operand 0, single buffered']
    #allocation3 [shape = 's32[1]{0}', space=sflag, size = 0x4, scoped, tag = 'scoped memory for tpu_custom_call.1']
    #allocation4 [shape = 's32[1]{0}', space=sflag, size = 0x4, scoped, tag = 'scoped memory for tpu_custom_call.1']
    #allocation5 [shape = 'u8[8192]{0}', space=vmem, size = 0x2000, scoped, tag = 'output window, operand 0, single buffered']
    %6 = vsyncpa [#allocation3], 0
    %7 = vsyncpa [#allocation4], 0
    // Predicated region
    $region2: #{tpu_custom_call.1} parent=1 // pred_check
      _
    $region3: #{tpu_custom_call.1} parent=1 // pred_check_branch
      %9 = sbr.rel (0) target = $region5
    $region4: #{tpu_custom_call.1} parent=1 // pred_region
      %s11 = ssub.s32 256, 256
      %12 = vsyncadd [#allocation3], %s11
      %s14 = sshll.u32 [#allocation2], 4
      %s15 = int_to_ptr.vmem [resolvable:$true] %s14
      %17 = dma.hbm_to_vmem [thread:$0]  %s0, 256, %s15, [#allocation3]
    $region5: #{tpu_custom_call.1} parent=1 // pred_fallthru
      _
    // Predicated region
    $region6: #{tpu_custom_call.1} parent=1 // pred_check
      _
    $region7: #{tpu_custom_call.1} parent=1 // pred_check_branch
      %19 = sbr.rel (0) target = $region9
    $region8: #{tpu_custom_call.1} parent=1 // pred_region
      %20 = dma.done [#allocation3], 256
    $region9: #{tpu_custom_call.1} parent=1 // pred_fallthru
      _
    %v21 = vld [vmem:[#allocation2] sm:$0xff]
    %v22 = vld [vmem:[#allocation2 + $0x8] sm:$0xff]
    %v23 = vadd.f32 %v21, 1.0
    %v24 = vadd.f32 %v22, 1.0
    %25 = vst [vmem:[#allocation5] sm:$0xff] %v23
    %26 = vst [vmem:[#allocation5 + $0x8] sm:$0xff] %v24
    // Predicated region
    $region10: #{tpu_custom_call.1} parent=1 // pred_check
      _
    $region11: #{tpu_custom_call.1} parent=1 // pred_check_branch
      %28 = sbr.rel (0) target = $region13
    $region12: #{tpu_custom_call.1} parent=1 // pred_region
      %s30 = ssub.s32 256, 256
      %31 = vsyncadd [#allocation4], %s30
      %s33 = sshll.u32 [#allocation5], 4
      %s34 = int_to_ptr.vmem [resolvable:$true] %s33
      %36 = dma.vmem_to_hbm [thread:$0]  %s34, 256, %s1, [#allocation4]
    $region13: #{tpu_custom_call.1} parent=1 // pred_fallthru
      _
    // Predicated region
    $region14: #{tpu_custom_call.1} parent=1 // pred_check
      _
    $region15: #{tpu_custom_call.1} parent=1 // pred_check_branch
      %38 = sbr.rel (0) target = $region17
    $region16: #{tpu_custom_call.1} parent=1 // pred_region
      %39 = dma.done [#allocation4], 256
    $region17: #{tpu_custom_call.1} parent=1 // pred_fallthru
      _
    %40 = vsyncpa [#allocation3], 1
    %41 = vsyncpa [#allocation4], 1

</llo_original>
